<compile_context>
chip_gen: v7x
topology: tpu7x:2x2x1
jax: 0.10.0
libtpu: 0.0.40
codegen_flags: <defaults>
</compile_context>

<pallas_src>
import math

import jax
import jax.numpy as jnp
from jax.experimental import pallas as pl
from jax.experimental.pallas import tpu as pltpu


def _rbf2_kernel(d_ref, off_ref, coeff_ref, out_ref):
    # d_ref:     (1, TILE_N)    f32  -- lane-dense tile of flattened distances
    # off_ref:   (n_k, 1)       f32  -- kernel offsets (sublane axis)
    # coeff_ref: (n_k, 1)       f32  -- per-kernel coefficients (already /4 from init)
    # out_ref:   (n_k, TILE_N)  f32
    e = jnp.exp(-d_ref[...])                       # (1, TILE_N): one exp per distance row
    diff = e - off_ref[...]                        # (n_k, TILE_N): sublane x lane broadcast
    out_ref[...] = jnp.exp(-coeff_ref[...] * (diff * diff))


def rbf2_forward(d, cell=5.0, n_kernel=20, offsets=None, coeff=None):
    """Pallas implementation of RBF2.forward.

    :param d: distances, shape (1, n_a, k), float32
    :return:  RBF-expanded distances, shape (1, n_a, k, n_kernel), float32
    """
    b, n_a, k = d.shape
    assert b == 1
    N = n_a * k

    # deterministic parameter values from RBF2.__init__ (they are nn.Parameters,
    # so arbitrary values may also be passed in)
    if offsets is None:
        offsets = jnp.linspace(math.exp(-cell), 1.0, n_kernel, dtype=jnp.float32)
    if coeff is None:
        c = ((1.0 - math.exp(-cell)) / n_kernel) ** (-2) / 4.0
        coeff = jnp.full((n_kernel,), c, dtype=jnp.float32)

    # --- lane-dense tiling over the flattened N axis ---
    LANE = 128
    MAX_TILE = 512                      # comfortably double-buffers on v7x's 64 MiB VMEM
    if N <= MAX_TILE:
        n_pad = ((N + LANE - 1) // LANE) * LANE
        tile = n_pad
    else:
        tile = MAX_TILE
        n_pad = ((N + tile - 1) // tile) * tile
    grid = (n_pad // tile,)

    d_flat = d.reshape(1, N).astype(jnp.float32)
    if n_pad != N:
        d_flat = jnp.pad(d_flat, ((0, 0), (0, n_pad - N)))

    off2 = offsets.reshape(n_kernel, 1).astype(jnp.float32)
    coeff2 = coeff.reshape(n_kernel, 1).astype(jnp.float32)

    cost = pl.CostEstimate(
        flops=3 * n_pad * n_kernel + n_pad,
        transcendentals=n_pad * n_kernel + n_pad,
        bytes_accessed=4 * (n_pad + n_pad * n_kernel + 2 * n_kernel),
    )

    out_t = pl.pallas_call(
        _rbf2_kernel,
        out_shape=jax.ShapeDtypeStruct((n_kernel, n_pad), jnp.float32),
        grid=grid,
        in_specs=[
            pl.BlockSpec((1, tile), lambda i: (0, i)),          # d tile (lane-dense)
            pl.BlockSpec((n_kernel, 1), lambda i: (0, 0)),      # offsets (resident)
            pl.BlockSpec((n_kernel, 1), lambda i: (0, 0)),      # coeff   (resident)
        ],
        out_specs=pl.BlockSpec((n_kernel, tile), lambda i: (0, i)),
        compiler_params=pltpu.CompilerParams(
            dimension_semantics=("parallel",),                  # shard N tiles across TCs (v7x)
        ),
        cost_estimate=cost,
    )(d_flat, off2, coeff2)

    out = out_t[:, :N]                                          # (n_k, N) drop lane padding
    return jnp.transpose(out, (1, 0)).reshape(b, n_a, k, n_kernel)


if __name__ == "__main__":
    key = jax.random.PRNGKey(0)
    n_a, k, n_kernel, cell = 48, 16, 20, 5.0   # N = 768 -> 2 lane tiles, exercises padding

    d = jax.random.uniform(key, (1, n_a, k), dtype=jnp.float32, minval=0.0, maxval=cell)
    d = d.at[0, 0, 0].set(0.0)   # exercise d == 0 path (well-defined for RBF2)

    out = rbf2_forward(d, cell=cell, n_kernel=n_kernel)
    out = jax.block_until_ready(out)

    # reference check in plain JAX (mirrors the PyTorch RBF2 math)
    offsets_ref = jnp.linspace(math.exp(-cell), 1.0, n_kernel, dtype=jnp.float32)[None, None, None, :]
    coeff_ref = ((1.0 - math.exp(-cell)) / n_kernel) ** (-2) / 4.0
    ref = jnp.exp(-coeff_ref * (jnp.exp(-d)[..., None] - offsets_ref) ** 2)

    assert out.shape == (1, n_a, k, n_kernel)
    assert jnp.allclose(out, ref, atol=1e-5, rtol=1e-5)

    print("KERNEL_OK")
</pallas_src>

<mosaic_0001>
module attributes {stable_mosaic.version = 11 : i64} {
  func.func @_rbf2_kernel(%arg0: i32, %arg1: memref<1x512xf32, #tpu.memory_space<vmem>>, %arg2: memref<20x1xf32, #tpu.memory_space<vmem>>, %arg3: memref<20x1xf32, #tpu.memory_space<vmem>>, %arg4: memref<20x512xf32, #tpu.memory_space<vmem>>) attributes {dimension_semantics = [#tpu.dimension_semantics<parallel>], iteration_bounds = array<i64: 2>, scalar_prefetch = 0 : i64, scratch_operands = 0 : i64, tpu.core_type = #tpu.core_type<tc>, window_params = [{transform_indices = @transform_0, window_bounds = array<i64: 1, 512>}, {pipeline_mode = #tpu.pipeline_mode<synchronous>, transform_indices = @transform_1, window_bounds = array<i64: 20, 1>}, {pipeline_mode = #tpu.pipeline_mode<synchronous>, transform_indices = @transform_2, window_bounds = array<i64: 20, 1>}, {transform_indices = @transform_3, window_bounds = array<i64: 20, 512>}]} {
    %c0 = arith.constant 0 : index
    %c0_0 = arith.constant 0 : index
    %0 = vector.load %arg1[%c0, %c0_0] : memref<1x512xf32, #tpu.memory_space<vmem>>, vector<1x512xf32>
    %cst = arith.constant 0.000000e+00 : f32
    %1 = vector.broadcast %cst : f32 to vector<1x512xf32>
    %2 = arith.subf %1, %0 : vector<1x512xf32>
    %3 = math.exp %2 : vector<1x512xf32>
    %c0_1 = arith.constant 0 : index
    %c0_2 = arith.constant 0 : index
    %4 = vector.load %arg2[%c0_1, %c0_2] : memref<20x1xf32, #tpu.memory_space<vmem>>, vector<20x1xf32>
    %5 = vector.broadcast %3 : vector<1x512xf32> to vector<20x512xf32>
    %6 = vector.broadcast %4 : vector<20x1xf32> to vector<20x512xf32>
    %7 = arith.subf %5, %6 : vector<20x512xf32>
    %c0_3 = arith.constant 0 : index
    %c0_4 = arith.constant 0 : index
    %8 = vector.load %arg3[%c0_3, %c0_4] : memref<20x1xf32, #tpu.memory_space<vmem>>, vector<20x1xf32>
    %cst_5 = arith.constant 0.000000e+00 : f32
    %9 = vector.broadcast %cst_5 : f32 to vector<20x1xf32>
    %10 = arith.subf %9, %8 : vector<20x1xf32>
    %11 = arith.mulf %7, %7 : vector<20x512xf32>
    %12 = vector.broadcast %10 : vector<20x1xf32> to vector<20x512xf32>
    %13 = arith.mulf %12, %11 : vector<20x512xf32>
    %14 = math.exp %13 : vector<20x512xf32>
    %c0_6 = arith.constant 0 : index
    %c0_7 = arith.constant 0 : index
    %15 = vector.load %arg4[%c0_6, %c0_7] : memref<20x512xf32, #tpu.memory_space<vmem>>, vector<20x512xf32>
    tpu.vector_store %arg4[%c0_6, %c0_7], %14 {strides = array<i32>} : memref<20x512xf32, #tpu.memory_space<vmem>>, vector<20x512xf32>,
    return
  }
  func.func @transform_0(%arg0: i32) -> (i32, i32) {
    %c0_i32 = arith.constant 0 : i32
    %c0_i32_0 = arith.constant 0 : i32
    return %c0_i32, %arg0 : i32, i32
  }
  func.func @transform_1(%arg0: i32) -> (i32, i32) {
    %c0_i32 = arith.constant 0 : i32
    %c0_i32_0 = arith.constant 0 : i32
    %c0_i32_1 = arith.constant 0 : i32
    return %c0_i32, %c0_i32_0 : i32, i32
  }
  func.func @transform_2(%arg0: i32) -> (i32, i32) {
    %c0_i32 = arith.constant 0 : i32
    %c0_i32_0 = arith.constant 0 : i32
    %c0_i32_1 = arith.constant 0 : i32
    return %c0_i32, %c0_i32_0 : i32, i32
  }
  func.func @transform_3(%arg0: i32) -> (i32, i32) {
    %c0_i32 = arith.constant 0 : i32
    %c0_i32_0 = arith.constant 0 : i32
    return %c0_i32, %arg0 : i32, i32
  }
}

</mosaic_0001>

<llo_original>
// kernel: tpu_custom_call.1
$region0: #{tpu_custom_call.1}
  #allocation0 [shape = 'u32[]', space=smem, size = 0x4, offset = 0x4, fixed_abs, tag = 'smem constant byte address 0x4 - core index']
  #allocation1 [shape = 'u32[144,128]{1,0:T(1,128)}', space=vmem, size = 0x12000, scoped, tag = 'internal scratch']
  %s0 = inlined_call_operand.vmem [shape: f32[1,1024], index: 0, kind: input, shape index: {}]
  %s1 = inlined_call_operand.vmem [shape: f32[20,1], index: 1, kind: input, shape index: {}]
  %s2 = inlined_call_operand.vmem [shape: f32[20,1], index: 2, kind: input, shape index: {}]
  %s3 = inlined_call_operand.hbm [shape: f32[20,1024], index: 3, kind: output, shape index: {}]
  %s4 = sld [smem:[#allocation0]]
  $region45: #{tpu_custom_call.1} parent=0
    _
  %s6 = ssub.s32 1, %s4
  %s7 = scalar_select 0, %s6, %s4
  $region1: #{tpu_custom_call.1} parent=0
    #allocation2 [shape = 'u8[98304]{0}', space=vmem, size = 0x18000, scoped, tag = 'output window, operand 0']
    #allocation3 [shape = 's32[2]{0}', space=sflag, size = 0x8, scoped, tag = 'scoped memory for tpu_custom_call.1']
    %8 = vsyncpa [#allocation3], 0
    %s9 = scalar_lea.sflag [#allocation3], 1
    %10 = vsyncpa %s9, 0
    loop: start=0, step=1, limit=4
    $region2: #{tpu_custom_call.1} parent=1 // loop_pre_header
      _
    $region3: #{tpu_custom_call.1} parent=1 // loop_header
      %s12 = sphi 0, %s16
      %p13 = scmp.ge.s32.totalorder %s12, 4
      %s22 = sphi 0, %s24
      %s25 = sphi 0, %s22
      %s26 = sphi 0, %s25
      %s42 = sphi 0, %s26
      %s46 = sphi 0, %s46
      %s48 = sphi 0, %s46
      %s49 = sphi 0, %s48
      %s63 = sphi 0, %s49
      %s67 = sphi 0, %s67
      %s69 = sphi 0, %s67
      %s70 = sphi 0, %s69
      %s84 = sphi 0, %s70
      %s90 = sphi 0, %s92
      %s93 = sphi 0, %s90
      %s94 = sphi 0, %s93
      %s110 = sphi 0, %s94
    $region4: #{tpu_custom_call.1} parent=1 // loop_header_branch
      %15 = sbr.rel (%p13) target = $region8
    $region5: #{tpu_custom_call.1} parent=1 // loop_body
      %s17 = ssub.s32 %s12, 1
      %s18 = ssub.s32 %s12, 2
      %s19 = sadd.s32 %s12, 1
      %s20 = ssub.s32 %s12, %s19
      %p21 = scmp.eq.s32.totalorder %s20, 0
      %s23 = sadd.s32 %s22, 1
      %s24 = scalar_select %p21, %s22, %s23
      %p27 = pneg %p21
      %p28 = scmp.eq.s32.totalorder %s12, 1
      %p29 = por %p27, %p28
      %p30 = scmp.ne.s32.totalorder %s22, %s25
      %p31 = scmp.eq.s32.totalorder %s12, 0
      %p32 = por %p30, %p31
      %p33 = scmp.ne.s32.totalorder %s22, %s25
      %p34 = scmp.eq.s32.totalorder %s17, 1
      %p35 = por %p33, %p34
      %p36 = scmp.ne.s32.totalorder %s25, %s26
      %p37 = scmp.eq.s32.totalorder %s17, 0
      %p38 = por %p36, %p37
      %p39 = scmp.ne.s32.totalorder %s25, %s26
      %p40 = scmp.eq.s32.totalorder %s18, 1
      %p41 = por %p39, %p40
      %p43 = scmp.ne.s32.totalorder %s26, %s42
      %p44 = scmp.eq.s32.totalorder %s18, 0
      %p45 = por %p43, %p44
      %s47 = sadd.s32 %s46, 1
      %p50 = scmp.eq.s32.totalorder %s12, 1
      %p51 = scmp.ne.s32.totalorder %s46, %s48
      %p52 = scmp.eq.s32.totalorder %s12, 0
      %p53 = por %p51, %p52
      %p54 = scmp.ne.s32.totalorder %s46, %s48
      %p55 = scmp.eq.s32.totalorder %s17, 1
      %p56 = por %p54, %p55
      %p57 = scmp.ne.s32.totalorder %s48, %s49
      %p58 = scmp.eq.s32.totalorder %s17, 0
      %p59 = por %p57, %p58
      %p60 = scmp.ne.s32.totalorder %s48, %s49
      %p61 = scmp.eq.s32.totalorder %s18, 1
      %p62 = por %p60, %p61
      %p64 = scmp.ne.s32.totalorder %s49, %s63
      %p65 = scmp.eq.s32.totalorder %s18, 0
      %p66 = por %p64, %p65
      %s68 = sadd.s32 %s67, 1
      %p71 = scmp.eq.s32.totalorder %s12, 1
      %p72 = scmp.ne.s32.totalorder %s67, %s69
      %p73 = scmp.eq.s32.totalorder %s12, 0
      %p74 = por %p72, %p73
      %p75 = scmp.ne.s32.totalorder %s67, %s69
      %p76 = scmp.eq.s32.totalorder %s17, 1
      %p77 = por %p75, %p76
      %p78 = scmp.ne.s32.totalorder %s69, %s70
      %p79 = scmp.eq.s32.totalorder %s17, 0
      %p80 = por %p78, %p79
      %p81 = scmp.ne.s32.totalorder %s69, %s70
      %p82 = scmp.eq.s32.totalorder %s18, 1
      %p83 = por %p81, %p82
      %p85 = scmp.ne.s32.totalorder %s70, %s84
      %p86 = scmp.eq.s32.totalorder %s18, 0
      %p87 = por %p85, %p86
      %s88 = ssub.s32 %s12, %s19
      %p89 = scmp.eq.s32.totalorder %s88, 0
      %s91 = sadd.s32 %s90, 1
      %s92 = scalar_select %p89, %s90, %s91
      %p95 = pneg %p89
      %p96 = scmp.eq.s32.totalorder %s12, 1
      %p97 = por %p95, %p96
      %p98 = scmp.ne.s32.totalorder %s90, %s93
      %p99 = scmp.eq.s32.totalorder %s12, 0
      %p100 = por %p98, %p99
      %p101 = scmp.ne.s32.totalorder %s90, %s93
      %p102 = scmp.eq.s32.totalorder %s17, 1
      %p103 = por %p101, %p102
      %p104 = scmp.ne.s32.totalorder %s93, %s94
      %p105 = scmp.eq.s32.totalorder %s17, 0
      %p106 = por %p104, %p105
      %p107 = scmp.ne.s32.totalorder %s93, %s94
      %p108 = scmp.eq.s32.totalorder %s18, 1
      %p109 = por %p107, %p108
      %p111 = scmp.ne.s32.totalorder %s94, %s110
      %p112 = scmp.eq.s32.totalorder %s18, 0
      %p113 = por %p111, %p112
      %p114 = scmp.le.s32.totalorder 1, %s12
      %p115 = scmp.lt.s32.totalorder %s12, 3
      %p116 = pnand %p114, %p115
      %p117 = pneg %p116
      // Predicated region
      $region9: #{tpu_custom_call.1} parent=5 // pred_check
        _
      $region10: #{tpu_custom_call.1} parent=5 // pred_check_branch
        %119 = sbr.rel (%p116) target = $region12
      $region11: #{tpu_custom_call.1} parent=5 // pred_region
        %s120 = ssub.s32 %s12, 1
        // Predicated region
        $region13: #{tpu_custom_call.1} parent=11 // pred_check
          %p121 = pneg %p59
        $region14: #{tpu_custom_call.1} parent=11 // pred_check_branch
          %123 = sbr.rel (%p121) target = $region16
        $region15: #{tpu_custom_call.1} parent=11 // pred_region
          _
        $region16: #{tpu_custom_call.1} parent=11 // pred_fallthru
          _
        // Predicated region
        $region17: #{tpu_custom_call.1} parent=11 // pred_check
          %p124 = pneg %p80
        $region18: #{tpu_custom_call.1} parent=11 // pred_check_branch
          %126 = sbr.rel (%p124) target = $region20
        $region19: #{tpu_custom_call.1} parent=11 // pred_region
          _
        $region20: #{tpu_custom_call.1} parent=11 // pred_fallthru
          _
      $region12: #{tpu_custom_call.1} parent=5 // pred_fallthru
        _
      %p127 = scmp.lt.s32.totalorder %s12, 2
      // Predicated region
      $region21: #{tpu_custom_call.1} parent=5 // pred_check
        %p128 = pneg %p127
      $region22: #{tpu_custom_call.1} parent=5 // pred_check_branch
        %130 = sbr.rel (%p128) target = $region24
      $region23: #{tpu_custom_call.1} parent=5 // pred_region
        // Predicated region
        $region25: #{tpu_custom_call.1} parent=23 // pred_check
          %p131 = pneg %p32
        $region26: #{tpu_custom_call.1} parent=23 // pred_check_branch
          %133 = sbr.rel (%p131) target = $region28
        $region27: #{tpu_custom_call.1} parent=23 // pred_region
          %s134 = smul.u32 4, %s12
          %p135 = scmp.lt.s32.totalorder %s134, 7
          %s136 = scalar_select %p135, %s134, 7
          %s137 = scalar_lea.vmem %s0, %s136
          %s138 = smul.u32 4, %s12
        $region28: #{tpu_custom_call.1} parent=23 // pred_fallthru
          _
      $region24: #{tpu_custom_call.1} parent=5 // pred_fallthru
        _
      %p139 = scmp.le.s32.totalorder 1, %s12
      %p140 = scmp.lt.s32.totalorder %s12, 3
      %p141 = pnand %p139, %p140
      %p142 = pneg %p141
      // Predicated region
      $region29: #{tpu_custom_call.1} parent=5 // pred_check
        _
      $region30: #{tpu_custom_call.1} parent=5 // pred_check_branch
        %144 = sbr.rel (%p141) target = $region32
      $region31: #{tpu_custom_call.1} parent=5 // pred_region
        %s145 = ssub.s32 %s12, 1
        %s146 = smul.u32 4, %s17
        %p147 = scmp.lt.s32.totalorder %s146, 7
        %s148 = scalar_select %p147, %s146, 7
        %s149 = scalar_lea.vmem %s0, %s148
        %p150 = pneg %p38
        %p151 = pneg %p35
        %p152 = pneg %p59
        %p153 = pneg %p56
        %p154 = pneg %p80
        %p155 = pneg %p77
        %p156 = pneg %p106
        %p157 = pneg %p103
        %s158 = sand.u32 %s93, 1
        %s159 = scalar_lea.sflag [#allocation3], %s158
        %s160 = sand.u32 %s93, 1
        %s161 = smul.addr %s160, 96
        %s162 = scalar_lea.vmem [#allocation2], %s161
        %s163 = smul.u32 4, %s17
        %p164 = scmp.lt.s32.totalorder %s163, 7
        %s165 = scalar_select %p164, %s163, 7
        %s166 = scalar_lea.vmem %s0, %s165
        %s167 = smul.u32 4, %s17
        %s168 = smul.u32 4, %s17
        %v169 = vld [vmem:[%s166] sm:$0xf]
        %v170 = vsub.f32 0.0, %v169
        %v171 = vmul.f32 %v170, 1.442695
        %v172 = vpow.pop %v171
        %v173 = vld [vmem:[%s1] sm:$0xff]
        %v174 = vld [vmem:[%s1 + $0x8] sm:$0xff]
        %v175 = vld [vmem:[%s1 + $0x10] sm:$0xf]
        %v177 = vlaneseq
        %v178 = vshrl.u32 %v177, 7
        %v179 = vsub.s32 0, %v178
        %v180 = vrot.slane %v172, %v179
        %v181 = vlaneseq
        %v182 = vshrl.u32 %v181, 7
        %v183 = vsub.s32 1, %v182
        %v184 = vrot.slane %v172, %v183
        %v185 = vlaneseq
        %v186 = vshrl.u32 %v185, 7
        %v187 = vsub.s32 2, %v186
        %v188 = vrot.slane %v172, %v187
        %v189 = vlaneseq
        %v190 = vshrl.u32 %v189, 7
        %v191 = vsub.s32 3, %v190
        %v192 = vrot.slane %v172, %v191
        %198 = vset.pattern.permute.xlu0 0
        %199 = vperm.xlu0 %198, %v173
        %v200 = vpop.permute.xlu0 %199
        %203 = vset.pattern.permute.xlu0 0
        %204 = vperm.xlu0 %203, %v174
        %v205 = vpop.permute.xlu0 %204
        %208 = vset.pattern.permute.xlu0 0
        %209 = vperm.xlu0 %208, %v175
        %v210 = vpop.permute.xlu0 %209
        %v212 = vsub.f32 %v180, %v200
        %v213 = vsub.f32 %v184, %v200
        %v214 = vsub.f32 %v188, %v200
        %v215 = vsub.f32 %v192, %v200
        %v216 = vsub.f32 %v180, %v205
        %v217 = vsub.f32 %v184, %v205
        %v218 = vsub.f32 %v188, %v205
        %v219 = vsub.f32 %v192, %v205
        %v220 = vsub.f32 %v180, %v210
        %v221 = vsub.f32 %v184, %v210
        %v222 = vsub.f32 %v188, %v210
        %v223 = vsub.f32 %v192, %v210
        %v224 = vld [vmem:[%s2] sm:$0xff]
        %v225 = vld [vmem:[%s2 + $0x8] sm:$0xff]
        %v226 = vld [vmem:[%s2 + $0x10] sm:$0xf]
        %v227 = vsub.f32 0.0, %v224
        %v228 = vsub.f32 0.0, %v225
        %v229 = vsub.f32 0.0, %v226
        %v230 = vmul.f32 %v212, %v212
        %v231 = vmul.f32 %v213, %v213
        %v232 = vmul.f32 %v214, %v214
        %v233 = vmul.f32 %v215, %v215
        %v234 = vmul.f32 %v216, %v216
        %v235 = vmul.f32 %v217, %v217
        %v236 = vmul.f32 %v218, %v218
        %v237 = vmul.f32 %v219, %v219
        %v238 = vmul.f32 %v220, %v220
        %v239 = vmul.f32 %v221, %v221
        %v240 = vmul.f32 %v222, %v222
        %v241 = vmul.f32 %v223, %v223
        %243 = vset.pattern.permute.xlu0 0
        %244 = vperm.xlu0 %243, %v227
        %v245 = vpop.permute.xlu0 %244
        %248 = vset.pattern.permute.xlu0 0
        %249 = vperm.xlu0 %248, %v228
        %v250 = vpop.permute.xlu0 %249
        %253 = vset.pattern.permute.xlu0 0
        %254 = vperm.xlu0 %253, %v229
        %v255 = vpop.permute.xlu0 %254
        %v257 = vmul.f32 %v245, %v230
        %v258 = vmul.f32 %v245, %v231
        %v259 = vmul.f32 %v245, %v232
        %v260 = vmul.f32 %v245, %v233
        %v261 = vmul.f32 %v250, %v234
        %v262 = vmul.f32 %v250, %v235
        %v263 = vmul.f32 %v250, %v236
        %v264 = vmul.f32 %v250, %v237
        %v265 = vmul.f32 %v255, %v238
        %v266 = vmul.f32 %v255, %v239
        %v267 = vmul.f32 %v255, %v240
        %v268 = vmul.f32 %v255, %v241
        %v269 = vmul.f32 %v257, 1.442695
        %v270 = vpow.pop %v269
        %v271 = vmul.f32 %v258, 1.442695
        %v272 = vpow.pop %v271
        %v273 = vmul.f32 %v259, 1.442695
        %v274 = vpow.pop %v273
        %v275 = vmul.f32 %v260, 1.442695
        %v276 = vpow.pop %v275
        %v277 = vmul.f32 %v261, 1.442695
        %v278 = vpow.pop %v277
        %v279 = vmul.f32 %v262, 1.442695
        %v280 = vpow.pop %v279
        %v281 = vmul.f32 %v263, 1.442695
        %v282 = vpow.pop %v281
        %v283 = vmul.f32 %v264, 1.442695
        %v284 = vpow.pop %v283
        %v285 = vmul.f32 %v265, 1.442695
        %v286 = vpow.pop %v285
        %v287 = vmul.f32 %v266, 1.442695
        %v288 = vpow.pop %v287
        %v289 = vmul.f32 %v267, 1.442695
        %v290 = vpow.pop %v289
        %v291 = vmul.f32 %v268, 1.442695
        %v292 = vpow.pop %v291
        %293 = vst [vmem:[%s162] sm:$0xff] %v270
        %294 = vst [vmem:[%s162 + $0x8] sm:$0xff] %v272
        %295 = vst [vmem:[%s162 + $0x10] sm:$0xff] %v274
        %296 = vst [vmem:[%s162 + $0x18] sm:$0xff] %v276
        %297 = vst [vmem:[%s162 + $0x20] sm:$0xff] %v278
        %298 = vst [vmem:[%s162 + $0x28] sm:$0xff] %v280
        %299 = vst [vmem:[%s162 + $0x30] sm:$0xff] %v282
        %300 = vst [vmem:[%s162 + $0x38] sm:$0xff] %v284
        %301 = vst [vmem:[%s162 + $0x40] sm:$0xf] %v286
        %302 = vst [vmem:[%s162 + $0x48] sm:$0xf] %v288
        %303 = vst [vmem:[%s162 + $0x50] sm:$0xf] %v290
        %304 = vst [vmem:[%s162 + $0x58] sm:$0xf] %v292
        %s305 = sand.u32 %s93, 1
        %s306 = scalar_lea.sflag [#allocation3], %s305
        %s307 = sand.u32 %s93, 1
        %s308 = smul.addr %s307, 96
        %s309 = scalar_lea.vmem [#allocation2], %s308
        // Predicated region
        $region33: #{tpu_custom_call.1} parent=31 // pred_check
          %p310 = pneg %p103
        $region34: #{tpu_custom_call.1} parent=31 // pred_check_branch
          %312 = sbr.rel (%p310) target = $region36
        $region35: #{tpu_custom_call.1} parent=31 // pred_region
          %s313 = smul.u32 4, %s17
          %s315 = ssub.s32 1536, 1536
          %316 = vsyncadd %s306, %s315
          %s317 = smul.addr %s313, 128
          %s318 = scalar_lea.hbm %s3, %s317
          %s319 = sshll.u32 %s309, 4
          %s320 = int_to_ptr.vmem [resolvable:$true] %s319
          %325 = dma.vmem_to_hbm [thread:$0]  %s320, 1536, %s318, %s306, 512, 1024, 32
        $region36: #{tpu_custom_call.1} parent=31 // pred_fallthru
          _
      $region32: #{tpu_custom_call.1} parent=5 // pred_fallthru
        _
      %p326 = scmp.le.s32.totalorder 2, %s12
      // Predicated region
      $region37: #{tpu_custom_call.1} parent=5 // pred_check
        %p327 = pneg %p326
      $region38: #{tpu_custom_call.1} parent=5 // pred_check_branch
        %329 = sbr.rel (%p327) target = $region40
      $region39: #{tpu_custom_call.1} parent=5 // pred_region
        %s330 = ssub.s32 %s12, 2
        // Predicated region
        $region41: #{tpu_custom_call.1} parent=39 // pred_check
          %p331 = pneg %p109
        $region42: #{tpu_custom_call.1} parent=39 // pred_check_branch
          %333 = sbr.rel (%p331) target = $region44
        $region43: #{tpu_custom_call.1} parent=39 // pred_region
          %s334 = sand.u32 %s94, 1
          %s335 = scalar_lea.sflag [#allocation3], %s334
          %s336 = sand.u32 %s94, 1
          %s337 = smul.addr %s336, 96
          %s338 = scalar_lea.vmem [#allocation2], %s337
          %339 = dma.done %s335, 1536
        $region44: #{tpu_custom_call.1} parent=39 // pred_fallthru
          _
      $region40: #{tpu_custom_call.1} parent=5 // pred_fallthru
        _
    $region6: #{tpu_custom_call.1} parent=1 // loop_footer
      %s16 = sadd.s32 1, %s12
    $region7: #{tpu_custom_call.1} parent=1 // loop_footer_branch
      %11 = sbr.rel target = $region3
    $region8: #{tpu_custom_call.1} parent=1 // loop_exit
      _
    %340 = vsyncpa [#allocation3], 1
    %s341 = scalar_lea.sflag [#allocation3], 1
    %342 = vsyncpa %s341, 1

</llo_original>
